<compile_context>
chip_gen: v5e
topology: v5e:2x2
jax: 0.10.0
libtpu: 0.0.40
codegen_flags: <defaults>
</compile_context>

<pallas_src>
import functools

import jax
import jax.numpy as jnp
from jax import lax
from jax.experimental import pallas as pl
from jax.experimental.pallas import tpu as pltpu


_LANES = 128
_MAX_BLOCK_LANES = 16 * 1024   # cap on T_HW (bounds the in-kernel lane-fold unroll)


def _channel_attention_kernel(x_ref, w1t_ref, w2t_ref, o_ref, acc_ref, *,
                              hw, t_hw, inv_hw, ragged):
    # x_ref:   (B, C, T_HW)   streamed spatial chunk
    # w1t_ref: (C, hidden)    fc[0] weight^T, f32, resident across grid steps
    # w2t_ref: (hidden, C)    fc[2] weight^T, f32, resident across grid steps
    # o_ref:   (B, C)         sigmoid attention weights (written on last chunk)
    # acc_ref: (B, C, 128)    lane-resident f32 running partial sums
    k = pl.program_id(1)
    nk = pl.num_programs(1)

    @pl.when(k == 0)
    def _init():
        acc_ref[...] = jnp.zeros_like(acc_ref)

    # Fold this chunk into the 128-lane accumulator with pure elementwise adds
    # (VPU only); the cross-lane reduction is deferred to the epilogue.
    nblk = t_hw // _LANES
    if ragged:
        lane = lax.broadcasted_iota(jnp.int32, (1, 1, _LANES), 2)  # hoisted
        chunk_start = k * t_hw
    partial = None
    for j in range(nblk):
        xs = x_ref[:, :, j * _LANES:(j + 1) * _LANES].astype(jnp.float32)
        if ragged:
            # Zero lanes past the true HW (exact for a sum; divide by HW once).
            xs = jnp.where(lane < (hw - chunk_start - j * _LANES), xs, 0.0)
        partial = xs if partial is None else partial + xs
    acc_ref[...] += partial

    @pl.when(k == nk - 1)
    def _epilogue():
        pooled = jnp.sum(acc_ref[...], axis=-1) * inv_hw          # (B, C) avg-pool
        h = jnp.dot(pooled, w1t_ref[...],
                    preferred_element_type=jnp.float32)           # 1x1 conv
        h = jnp.maximum(h, 0.0)                                   # ReLU
        out = jnp.dot(h, w2t_ref[...],
                      preferred_element_type=jnp.float32)         # 1x1 conv
        o_ref[...] = jax.nn.sigmoid(out).astype(o_ref.dtype)      # Sigmoid


def _vmem_capacity_bytes():
    try:
        return int(pltpu.get_tpu_info().vmem_capacity_bytes)
    except Exception:
        return 64 * 1024 * 1024   # conservative (v7x per-core VMEM)


def _choose_tiles(N, C, HW, itemsize, vmem_cap):
    """Pick (batch block B, HW chunk T_HW)."""
    hw_lanes = pl.cdiv(HW, _LANES) * _LANES          # lane-aligned full HW extent
    b_min = N if N <= 8 else 8

    # Generation-aware budget for double-buffered x tile + lane-resident acc:
    # ~51 MiB on 128 MiB VMEM parts (v5e/v6e), ~25 MiB on v7x (64 MiB/TC).
    budget = max(8 * 1024 * 1024, min(int(vmem_cap * 0.4), 64 * 1024 * 1024))

    def footprint(b, t):
        return 2 * b * C * t * itemsize + b * C * _LANES * 4

    if hw_lanes <= _MAX_BLOCK_LANES and footprint(b_min, hw_lanes) <= budget:
        # Single HW chunk: one contiguous DMA per (batch, C, HW) slab.
        t_hw = hw_lanes
        if N <= 8:
            B = N                                   # full-extent (B, C) out block
        else:
            n_pad8 = pl.cdiv(N, 8) * 8
            per_b = 2 * C * t_hw * itemsize + C * _LANES * 4
            B = max(8, ((budget // per_b) // 8) * 8)   # fill budget, sublane-aligned
            B = min(B, n_pad8)
            if N >= 16:
                # Keep >= 2 (roughly balanced) batch blocks for v7x's 2 TensorCores.
                B = min(B, max(8, ((N // 2) // 8) * 8))
    else:
        # Stream HW in lane-aligned chunks with the minimum batch block.
        B = b_min
        max_t = (budget - B * C * _LANES * 4) // max(1, 2 * B * C * itemsize)
        t_hw = max(_LANES, (max_t // _LANES) * _LANES)
        t_hw = min(t_hw, hw_lanes, _MAX_BLOCK_LANES)
    return int(B), int(t_hw)


def channel_attention(x, w1, w2, *, block_batch=None, block_hw=None):
    """x: (N, C, H, W) NCHW.  w1: (hidden, C, 1, 1).  w2: (C, hidden, 1, 1).
    Returns (N, C, 1, 1) sigmoid attention weights (same semantics as the
    PyTorch ChannelAttention.forward)."""
    N, C, H, W = x.shape
    hidden = w1.shape[0]
    HW = H * W
    itemsize = jnp.dtype(x.dtype).itemsize

    vmem_cap = _vmem_capacity_bytes()
    B, T_HW = _choose_tiles(N, C, HW, itemsize, vmem_cap)
    if block_batch is not None:               # test/debug overrides
        B = int(block_batch)
    if block_hw is not None:
        assert block_hw % _LANES == 0
        T_HW = int(block_hw)

    num_n_blocks = pl.cdiv(N, B)
    num_hw_blocks = pl.cdiv(HW, T_HW)
    N_pad = num_n_blocks * B                  # only the (tiny) output is padded
    ragged = (HW % T_HW) != 0                 # final HW chunk needs lane masking

    x_flat = x.reshape(N, C, HW)              # free reshape; x is never copied/padded
    w1t = w1.reshape(hidden, C).T.astype(jnp.float32)   # (C, hidden), cast once
    w2t = w2.reshape(C, hidden).T.astype(jnp.float32)   # (hidden, C), cast once

    kernel = functools.partial(_channel_attention_kernel, hw=HW, t_hw=T_HW,
                               inv_hw=1.0 / float(HW), ragged=ragged)

    # VMEM limit from the actual footprint, clamped under this chip's capacity.
    x_dbuf = 2 * B * C * T_HW * itemsize
    w_bytes = 2 * (C * hidden + hidden * C) * 4
    out_bytes = 2 * B * C * itemsize
    acc_bytes = B * C * _LANES * 4
    need = x_dbuf + w_bytes + out_bytes + acc_bytes + (2 << 20)
    vmem_limit = int(max(32 * 1024 * 1024, min(need, int(vmem_cap * 0.95))))

    cost = pl.CostEstimate(
        flops=int(N * C * HW + 4 * N * C * hidden),
        transcendentals=int(N * C),
        bytes_accessed=int(N * C * HW * itemsize + 2 * C * hidden * 4
                           + N * C * itemsize),
    )

    out = pl.pallas_call(
        kernel,
        out_shape=jax.ShapeDtypeStruct((N_pad, C), x.dtype),
        grid_spec=pltpu.PrefetchScalarGridSpec(
            num_scalar_prefetch=0,
            grid=(num_n_blocks, num_hw_blocks),
            in_specs=[
                pl.BlockSpec((B, C, T_HW), lambda i, k: (i, 0, k)),
                pl.BlockSpec((C, hidden), lambda i, k: (0, 0)),   # resident
                pl.BlockSpec((hidden, C), lambda i, k: (0, 0)),   # resident
            ],
            out_specs=pl.BlockSpec((B, C), lambda i, k: (i, 0)),
            scratch_shapes=[pltpu.VMEM((B, C, _LANES), jnp.float32)],
        ),
        compiler_params=pltpu.CompilerParams(
            dimension_semantics=("parallel", "arbitrary"),
            vmem_limit_bytes=vmem_limit,
        ),
        cost_estimate=cost,
    )(x_flat, w1t, w2t)

    return out[:N].reshape(N, C, 1, 1)


def reference_channel_attention(x, w1, w2):
    # Pure-JAX (f32) reference for verification.
    N, C, H, W = x.shape
    hidden = w1.shape[0]
    avg = jnp.mean(x.astype(jnp.float32), axis=(2, 3))                  # (N, C)
    h = jnp.maximum(avg @ w1.reshape(hidden, C).T.astype(jnp.float32), 0.0)
    out = h @ w2.reshape(C, hidden).T.astype(jnp.float32)
    return jax.nn.sigmoid(out).reshape(N, C, 1, 1)


def _check(N, C, H, W, hidden, seed, dtype=jnp.float32, atol=1e-5, rtol=1e-5, **kw):
    key = jax.random.PRNGKey(seed)
    k_x, k_w1, k_w2 = jax.random.split(key, 3)
    x = jax.random.normal(k_x, (N, C, H, W), dtype=jnp.float32).astype(dtype)
    w1 = jax.random.normal(k_w1, (hidden, C, 1, 1), dtype=jnp.float32) * 0.1
    w2 = jax.random.normal(k_w2, (C, hidden, 1, 1), dtype=jnp.float32) * 0.1

    out = jax.block_until_ready(channel_attention(x, w1, w2, **kw))
    ref = reference_channel_attention(x, w1, w2)
    assert out.shape == (N, C, 1, 1)
    ok = jnp.allclose(out.astype(jnp.float32), ref, atol=atol, rtol=rtol)
    assert ok, (f"mismatch (N={N},C={C},H={H},W={W},dtype={dtype}): max abs diff = "
                f"{jnp.max(jnp.abs(out.astype(jnp.float32) - ref))}")


if __name__ == "__main__":
    # Primary small case (single HW chunk, exact lane multiple).
    _check(N=2, C=4, H=16, W=16, hidden=32, seed=0)
    # Ragged HW (2025) + forced multi-chunk streaming path (masked final chunk).
    _check(N=5, C=8, H=45, W=45, hidden=32, seed=1, block_hw=512)
    # Larger-C bf16 path (sublane packing, MXU-sized matmuls), default tiling.
    _check(N=4, C=256, H=16, W=16, hidden=64, seed=2, dtype=jnp.bfloat16,
           atol=2e-2, rtol=2e-2)
    # Batch overhang (N not a multiple of the batch block) + sub-128 HW masking.
    _check(N=10, C=16, H=7, W=7, hidden=32, seed=3)
    print("KERNEL_OK")
</pallas_src>

<mosaic_0001>
module attributes {stable_mosaic.version = 11 : i64} {
  func.func @_channel_attention_kernel(%arg0: i32, %arg1: i32, %arg2: memref<2x4x256xf32, #tpu.memory_space<vmem>>, %arg3: memref<4x32xf32, #tpu.memory_space<vmem>>, %arg4: memref<32x4xf32, #tpu.memory_space<vmem>>, %arg5: memref<2x4xf32, #tpu.memory_space<vmem>>, %arg6: memref<2x4x128xf32, #tpu.memory_space<vmem>>) attributes {dimension_semantics = [#tpu.dimension_semantics<parallel>, #tpu.dimension_semantics<arbitrary>], iteration_bounds = array<i64: 1, 1>, scalar_prefetch = 0 : i64, scratch_operands = 1 : i64, tpu.core_type = #tpu.core_type<tc>, window_params = [{transform_indices = @transform_0, window_bounds = array<i64: 2, 4, 256>}, {pipeline_mode = #tpu.pipeline_mode<synchronous>, transform_indices = @transform_1, window_bounds = array<i64: 4, 32>}, {pipeline_mode = #tpu.pipeline_mode<synchronous>, transform_indices = @transform_2, window_bounds = array<i64: 32, 4>}, {transform_indices = @transform_3, window_bounds = array<i64: 2, 4>}]} {
    %c0_i32 = arith.constant 0 : i32
    %0 = arith.cmpi eq, %arg1, %c0_i32 : i32
    %1 = arith.extui %0 : i1 to i32
    %c0_i32_0 = arith.constant 0 : i32
    %2 = arith.cmpi ne, %1, %c0_i32_0 : i32
    scf.if %2 {
      %cst = arith.constant 0.000000e+00 : f32
      %12 = vector.broadcast %cst : f32 to vector<2x4x128xf32>
      %c0_13 = arith.constant 0 : index
      %c0_14 = arith.constant 0 : index
      %c0_15 = arith.constant 0 : index
      %13 = vector.load %arg6[%c0_13, %c0_14, %c0_15] : memref<2x4x128xf32, #tpu.memory_space<vmem>>, vector<2x4x128xf32>
      tpu.vector_store %arg6[%c0_13, %c0_14, %c0_15], %12 {strides = array<i32>} : memref<2x4x128xf32, #tpu.memory_space<vmem>>, vector<2x4x128xf32>,
    } else {
    }
    %c0 = arith.constant 0 : index
    %c0_1 = arith.constant 0 : index
    %c0_2 = arith.constant 0 : index
    %3 = vector.load %arg2[%c0, %c0_1, %c0_2] : memref<2x4x256xf32, #tpu.memory_space<vmem>>, vector<2x4x128xf32>
    %c0_3 = arith.constant 0 : index
    %c0_4 = arith.constant 0 : index
    %c128 = arith.constant 128 : index
    %4 = vector.load %arg2[%c0_3, %c0_4, %c128] : memref<2x4x256xf32, #tpu.memory_space<vmem>>, vector<2x4x128xf32>
    %5 = arith.addf %3, %4 : vector<2x4x128xf32>
    %c0_5 = arith.constant 0 : index
    %c0_6 = arith.constant 0 : index
    %c0_7 = arith.constant 0 : index
    %6 = vector.load %arg6[%c0_5, %c0_6, %c0_7] : memref<2x4x128xf32, #tpu.memory_space<vmem>>, vector<2x4x128xf32>
    %7 = arith.addf %6, %5 : vector<2x4x128xf32>
    %c0_8 = arith.constant 0 : index
    %c0_9 = arith.constant 0 : index
    %c0_10 = arith.constant 0 : index
    %8 = vector.load %arg6[%c0_8, %c0_9, %c0_10] : memref<2x4x128xf32, #tpu.memory_space<vmem>>, vector<2x4x128xf32>
    tpu.vector_store %arg6[%c0_8, %c0_9, %c0_10], %7 {strides = array<i32>} : memref<2x4x128xf32, #tpu.memory_space<vmem>>, vector<2x4x128xf32>,
    %c0_i32_11 = arith.constant 0 : i32
    %9 = arith.cmpi eq, %arg1, %c0_i32_11 : i32
    %10 = arith.extui %9 : i1 to i32
    %c0_i32_12 = arith.constant 0 : i32
    %11 = arith.cmpi ne, %10, %c0_i32_12 : i32
    scf.if %11 {
      %c0_13 = arith.constant 0 : index
      %c0_14 = arith.constant 0 : index
      %c0_15 = arith.constant 0 : index
      %12 = vector.load %arg6[%c0_13, %c0_14, %c0_15] : memref<2x4x128xf32, #tpu.memory_space<vmem>>, vector<2x4x128xf32>
      %cst = arith.constant dense<0.000000e+00> : vector<2x4xf32>
      %13 = vector.multi_reduction <add>, %12, %cst [2] : vector<2x4x128xf32> to vector<2x4xf32>
      %cst_16 = arith.constant 3.906250e-03 : f32
      %14 = vector.broadcast %cst_16 : f32 to vector<2x4xf32>
      %15 = arith.mulf %13, %14 : vector<2x4xf32>
      %c0_17 = arith.constant 0 : index
      %c0_18 = arith.constant 0 : index
      %16 = vector.load %arg3[%c0_17, %c0_18] : memref<4x32xf32, #tpu.memory_space<vmem>>, vector<4x32xf32>
      %cst_19 = arith.constant dense<0.000000e+00> : vector<2x32xf32>
      %17 = tpu.matmul %15, %16, %cst_19 {dimension_numbers = #tpu.dot_dimension_numbers<[1], [0], [0], [1], [0, 0, 1, 1], [], []>} : vector<2x4xf32>, vector<4x32xf32>, vector<2x32xf32> -> vector<2x32xf32>
      %cst_20 = arith.constant 0.000000e+00 : f32
      %18 = vector.broadcast %cst_20 : f32 to vector<2x32xf32>
      %19 = arith.maximumf %17, %18 : vector<2x32xf32>
      %c0_21 = arith.constant 0 : index
      %c0_22 = arith.constant 0 : index
      %20 = vector.load %arg4[%c0_21, %c0_22] : memref<32x4xf32, #tpu.memory_space<vmem>>, vector<32x4xf32>
      %cst_23 = arith.constant dense<0.000000e+00> : vector<2x4xf32>
      %21 = tpu.matmul %19, %20, %cst_23 {dimension_numbers = #tpu.dot_dimension_numbers<[1], [0], [0], [1], [0, 0, 1, 1], [], []>} : vector<2x32xf32>, vector<32x4xf32>, vector<2x4xf32> -> vector<2x4xf32>
      %22 = arith.negf %21 : vector<2x4xf32>
      %23 = math.exp %22 : vector<2x4xf32>
      %cst_24 = arith.constant 1.000000e+00 : f32
      %24 = vector.broadcast %cst_24 : f32 to vector<2x4xf32>
      %25 = arith.addf %24, %23 : vector<2x4xf32>
      %26 = arith.divf %24, %25 : vector<2x4xf32>
      %c0_25 = arith.constant 0 : index
      %c0_26 = arith.constant 0 : index
      %27 = vector.load %arg5[%c0_25, %c0_26] : memref<2x4xf32, #tpu.memory_space<vmem>>, vector<2x4xf32>
      tpu.vector_store %arg5[%c0_25, %c0_26], %26 {strides = array<i32>} : memref<2x4xf32, #tpu.memory_space<vmem>>, vector<2x4xf32>,
    } else {
    }
    return
  }
  func.func @transform_0(%arg0: i32, %arg1: i32) -> (i32, i32, i32) {
    %c0_i32 = arith.constant 0 : i32
    %c0_i32_0 = arith.constant 0 : i32
    return %arg0, %c0_i32, %arg1 : i32, i32, i32
  }
  func.func @transform_1(%arg0: i32, %arg1: i32) -> (i32, i32) {
    %c0_i32 = arith.constant 0 : i32
    %c0_i32_0 = arith.constant 0 : i32
    %c0_i32_1 = arith.constant 0 : i32
    return %c0_i32, %c0_i32_0 : i32, i32
  }
  func.func @transform_2(%arg0: i32, %arg1: i32) -> (i32, i32) {
    %c0_i32 = arith.constant 0 : i32
    %c0_i32_0 = arith.constant 0 : i32
    %c0_i32_1 = arith.constant 0 : i32
    return %c0_i32, %c0_i32_0 : i32, i32
  }
  func.func @transform_3(%arg0: i32, %arg1: i32) -> (i32, i32) {
    %c0_i32 = arith.constant 0 : i32
    %c0_i32_0 = arith.constant 0 : i32
    return %arg0, %c0_i32 : i32, i32
  }
}

</mosaic_0001>

<llo_original>
// kernel: tpu_custom_call.1
$region0: #{tpu_custom_call.1}
  #allocation0 [shape = 'u32[]', space=smem, size = 0x4, offset = 0x4, fixed_abs, tag = 'smem constant byte address 0x4 - core index']
  #allocation1 [shape = 'u32[72,128]{1,0:T(1,128)}', space=vmem, size = 0x9000, scoped, tag = 'internal scratch']
  #allocation2 [shape = 'f32[2,4,128]{2,1,0:T(4,128)}', space=vmem, size = 0x1000, scoped, tag = 'scratch operand']
  %s0 = inlined_call_operand.vmem [shape: f32[2,4,256], index: 0, kind: input, shape index: {}]
  %s1 = inlined_call_operand.vmem [shape: f32[4,32], index: 1, kind: input, shape index: {}]
  %s2 = inlined_call_operand.vmem [shape: f32[32,4], index: 2, kind: input, shape index: {}]
  %s3 = inlined_call_operand.hbm [shape: f32[2,4], index: 3, kind: output, shape index: {}]
  %s4 = sld [smem:[#allocation0]]
  $region30: #{tpu_custom_call.1} parent=0
    _
  %s6 = ssub.s32 1, %s4
  %s7 = scalar_select 0, %s6, %s4
  $region1: #{tpu_custom_call.1} parent=0
    #allocation3 [shape = 'u8[1024]{0}', space=vmem, size = 0x400, scoped, tag = 'output window, operand 0, single buffered']
    #allocation4 [shape = 's32[1]{0}', space=sflag, size = 0x4, scoped, tag = 'scoped memory for tpu_custom_call.1']
    %8 = vsyncpa [#allocation4], 0
    // Predicated region
    $region2: #{tpu_custom_call.1} parent=1 // pred_check
      _
    $region3: #{tpu_custom_call.1} parent=1 // pred_check_branch
      %10 = sbr.rel (0) target = $region5
    $region4: #{tpu_custom_call.1} parent=1 // pred_region
      _
    $region5: #{tpu_custom_call.1} parent=1 // pred_fallthru
      _
    // Predicated region
    $region6: #{tpu_custom_call.1} parent=1 // pred_check
      _
    $region7: #{tpu_custom_call.1} parent=1 // pred_check_branch
      %12 = sbr.rel (0) target = $region9
    $region8: #{tpu_custom_call.1} parent=1 // pred_region
      _
    $region9: #{tpu_custom_call.1} parent=1 // pred_fallthru
      _
    // Predicated region
    $region10: #{tpu_custom_call.1} parent=1 // pred_check
      _
    $region11: #{tpu_custom_call.1} parent=1 // pred_check_branch
      %14 = sbr.rel (0) target = $region13
    $region12: #{tpu_custom_call.1} parent=1 // pred_region
      _
    $region13: #{tpu_custom_call.1} parent=1 // pred_fallthru
      _
    %p15 = scmp.eq.s32.totalorder 0, 0
    // Predicated region
    $region14: #{tpu_custom_call.1} parent=1 // pred_check
      %p16 = pneg %p15
    $region15: #{tpu_custom_call.1} parent=1 // pred_check_branch
      %18 = sbr.rel (%p16) target = $region17
    $region16: #{tpu_custom_call.1} parent=1 // pred_region
      %19 = vst [vmem:[#allocation2] sm:$0xf] 0.0
      %20 = vst [vmem:[#allocation2 + $0x4] sm:$0xf] 0.0
    $region17: #{tpu_custom_call.1} parent=1 // pred_fallthru
      _
    %v21 = vld [vmem:[%s0] sm:$0xf]
    %v22 = vld [vmem:[%s0 + $0x8] sm:$0xf]
    %v23 = vld [vmem:[%s0 + $0x4] sm:$0xf]
    %v24 = vld [vmem:[%s0 + $0xc] sm:$0xf]
    %v25 = vadd.f32 %v21, %v23
    %v26 = vadd.f32 %v22, %v24
    %v27 = vld [vmem:[#allocation2] sm:$0xf]
    %v28 = vld [vmem:[#allocation2 + $0x4] sm:$0xf]
    %v29 = vadd.f32 %v27, %v25
    %v30 = vadd.f32 %v28, %v26
    %31 = vst [vmem:[#allocation2] sm:$0xf] %v29
    %32 = vst [vmem:[#allocation2 + $0x4] sm:$0xf] %v30
    // Predicated region
    $region18: #{tpu_custom_call.1} parent=1 // pred_check
      %p33 = pneg %p15
    $region19: #{tpu_custom_call.1} parent=1 // pred_check_branch
      %35 = sbr.rel (%p33) target = $region21
    $region20: #{tpu_custom_call.1} parent=1 // pred_region
      %v36 = vld [vmem:[#allocation2] sm:$0xf]
      %v37 = vld [vmem:[#allocation2 + $0x4] sm:$0xf]
      %vm38 = vcmask 1043456
      %v39 = vsel %vm38, %v36, 0.0
      %40 = vadd.xlane.f32.xlu0 %v39
      %v41 = vpop.xlane.xlu0 %40
      %v42 = vsel %vm38, %v37, 0.0
      %43 = vadd.xlane.f32.xlu0 %v42
      %v44 = vpop.xlane.xlu0 %43
      %v45 = vmul.f32 %v41, 0.00390625
      %v46 = vmul.f32 %v44, 0.00390625
      %v47 = vld [vmem:[%s1] sm:$0xf]
      %v50 = vlaneseq
      %v51 = vand.u32 %v50, 127
      %v52 = vperm.slane %v45, %v51
      %v53 = vperm.slane %v46, %v51
      %vm54 = vcmask 1041409
      %v55 = vsel %vm54, %v53, %v52
      %vm56 = vcmask 31744
      %v57 = vsel %vm56, %v55, 0
      %v60 = vsel %vm38, %v47, 0
      %62 = vmatpush.msra.mxu0 0.0
      %63 = vmatpush.msra.mxu0 0.0
      %64 = vmatpush.msra.mxu0 0.0
      %65 = vmatpush.msra.mxu0 0.0
      %66 = vmatpush.msra.mxu0 0.0
      %67 = vmatpush.msra.mxu0 0.0
      %68 = vmatpush.msra.mxu0 0.0
      %69 = vmatpush.msra.mxu0 0.0
      %70 = vmatpush.msra.mxu0 0.0
      %71 = vmatpush.msra.mxu0 0.0
      %72 = vmatpush.msra.mxu0 0.0
      %73 = vmatpush.msra.mxu0 0.0
      %74 = vmatpush.msra.mxu0 0.0
      %75 = vmatpush.msra.mxu0 0.0
      %76 = vmatpush.msra.mxu0 0.0
      %77 = vmatpush.msra.mxu0 %v60
      %78 = vmatmul.f32.gmra.mxu0 %v57
      %v79 = vpop.f32.mrf.mxu0
      %v80 = vadd.f32 0.0, %v79
      %81 = vdwg.mxu0
      %v82 = vmax.f32 %v80, 0.0
      %v83 = vld [vmem:[%s2] sm:$0xff]
      %v84 = vld [vmem:[%s2 + $0x8] sm:$0xff]
      %v85 = vld [vmem:[%s2 + $0x10] sm:$0xff]
      %v86 = vld [vmem:[%s2 + $0x18] sm:$0xff]
      %vm87 = vcmask 261120
      %v89 = vsel %vm87, %v82, 0
      %91 = vmatpush.msra.mxu0 0.0
      %92 = vmatpush.msra.mxu0 0.0
      %93 = vmatpush.msra.mxu0 0.0
      %94 = vmatpush.msra.mxu0 0.0
      %95 = vmatpush.msra.mxu0 0.0
      %96 = vmatpush.msra.mxu0 0.0
      %97 = vmatpush.msra.mxu0 0.0
      %98 = vmatpush.msra.mxu0 0.0
      %99 = vmatpush.msra.mxu0 0.0
      %100 = vmatpush.msra.mxu0 0.0
      %101 = vmatpush.msra.mxu0 0.0
      %102 = vmatpush.msra.mxu0 0.0
      %103 = vmatpush.msra.mxu0 %v86
      %104 = vmatpush.msra.mxu0 %v85
      %105 = vmatpush.msra.mxu0 %v84
      %106 = vmatpush.msra.mxu0 %v83
      %107 = vmatmul.f32.gmra.mxu0 %v89
      %v108 = vpop.f32.mrf.mxu0
      %v109 = vadd.f32 0.0, %v108
      %110 = vdwg.mxu0
      %v111 = vxor.u32 %v109, 2147483648
      %v112 = vmul.f32 %v111, 1.442695
      %v113 = vpow.pop %v112
      %v114 = vadd.f32 %v113, 1.0
      %v115 = vrcp.pop %v114
      %v116 = vmul.f32 %v114, %v115
      %v117 = vsub.f32 1.0, %v116
      %v118 = vmul.f32 %v115, %v117
      %v119 = vadd.f32 %v115, %v118
      %vm120 = vweird.f32 %v114
      %vm121 = vweird.f32 %v115
      %vm122 = vmor %vm120, %vm121
      %v123 = vsel %vm122, %v115, %v119
      %v124 = vand.u32 2147483647, %v114
      %vm125 = vcmp.eq.f32.partialorder %v124, 8.507059e+37
      %v126 = vand.u32 %v114, 2147483648
      %v127 = vor.u32 1.1754944e-38, %v126
      %v128 = vsel %vm125, %v127, %v123
      %v129 = vmul.f32 1.0, %v128
      %vm130 = vcmask 25600
      %131 = vst.msk [vmem:[#allocation3] sm:$0x3] %vm130, %v129
    $region21: #{tpu_custom_call.1} parent=1 // pred_fallthru
      _
    // Predicated region
    $region22: #{tpu_custom_call.1} parent=1 // pred_check
      _
    $region23: #{tpu_custom_call.1} parent=1 // pred_check_branch
      %133 = sbr.rel (0) target = $region25
    $region24: #{tpu_custom_call.1} parent=1 // pred_region
      %135 = vsyncadd [#allocation4], 0
      %s137 = sshll.u32 [#allocation3], 4
      %s138 = int_to_ptr.vmem [resolvable:$true] %s137
      %s139 = sshll.u32 %s3, 4
      %s140 = int_to_ptr.hbm [resolvable:$true] %s139
      %142 = dma.vmem_to_hbm [thread:$0]  %s138, 32, %s140, [#allocation4]
    $region25: #{tpu_custom_call.1} parent=1 // pred_fallthru
      _
    // Predicated region
    $region26: #{tpu_custom_call.1} parent=1 // pred_check
      _
    $region27: #{tpu_custom_call.1} parent=1 // pred_check_branch
      %144 = sbr.rel (0) target = $region29
    $region28: #{tpu_custom_call.1} parent=1 // pred_region
      %146 = dma.done [#allocation4], 32
    $region29: #{tpu_custom_call.1} parent=1 // pred_fallthru
      _
    %147 = vsyncpa [#allocation4], 1

</llo_original>
